<compile_context>
chip_gen: v7x
topology: tpu7x:2x2x1
jax: 0.10.0
libtpu: 0.0.40
codegen_flags: <defaults>
</compile_context>

<pallas_src>
import math

import jax
import jax.numpy as jnp
from jax.experimental import pallas as pl
from jax.experimental.pallas import tpu as pltpu


# ---------------------------------------------------------------------------
# helpers
# ---------------------------------------------------------------------------
def _round_up(x: int, m: int) -> int:
    return ((x + m - 1) // m) * m


def _pad_features(x, fp: int):
    """Zero-pad last dim of [N, F] f32 array to Fp lanes."""
    x = x.astype(jnp.float32)
    f = x.shape[-1]
    if f == fp:
        return x
    return jnp.pad(x, ((0, 0), (0, fp - f)))


def _pick_tile(dim: int, cap: int, align: int) -> int:
    """Largest tile <= cap that divides dim and is align-aligned (else full dim)."""
    if dim <= cap:
        return dim
    t = (cap // align) * align
    while t >= align:
        if dim % t == 0:
            return t
        t -= align
    return dim


# ---------------------------------------------------------------------------
# Kernel 1: tiled dense matmul  O = P @ X   (bf16 MXU operands, f32 accum)
# Used to precompute the shared homophily bases [X, PX, ..., P^K X].
# ---------------------------------------------------------------------------
def _matmul_kernel(a_ref, b_ref, o_ref, acc_ref):
    @pl.when(pl.program_id(2) == 0)
    def _():
        acc_ref[...] = jnp.zeros_like(acc_ref)

    acc_ref[...] += jnp.dot(a_ref[...], b_ref[...],
                            preferred_element_type=jnp.float32)

    @pl.when(pl.program_id(2) == pl.num_programs(2) - 1)
    def _():
        o_ref[...] = acc_ref[...].astype(o_ref.dtype)


def pallas_matmul(p, x, *, tm_cap=256, tn_cap=512, tk_cap=512):
    """O = P @ X, tiled + pipelined, bf16 operands, f32 output."""
    p = p.astype(jnp.bfloat16)
    x = x.astype(jnp.bfloat16)
    m, k = p.shape
    k2, n = x.shape
    assert k == k2
    tm = _pick_tile(m, tm_cap, 8)
    tk = _pick_tile(k, tk_cap, 8)
    tn = _pick_tile(n, tn_cap, 128)
    cost = pl.CostEstimate(
        flops=2 * m * k * n,
        transcendentals=0,
        bytes_accessed=(m * k + k * n) * 2 + m * n * 4,
    )
    return pl.pallas_call(
        _matmul_kernel,
        out_shape=jax.ShapeDtypeStruct((m, n), jnp.float32),
        grid_spec=pltpu.PrefetchScalarGridSpec(
            num_scalar_prefetch=0,
            grid=(m // tm, n // tn, k // tk),
            in_specs=[pl.BlockSpec((tm, tk), lambda i, j, kk: (i, kk)),
                      pl.BlockSpec((tk, tn), lambda i, j, kk: (kk, j))],
            out_specs=pl.BlockSpec((tm, tn), lambda i, j, kk: (i, j)),
            scratch_shapes=[pltpu.VMEM((tm, tn), jnp.float32)]),
        compiler_params=pltpu.CompilerParams(
            dimension_semantics=("parallel", "parallel", "arbitrary")),
        cost_estimate=cost,
    )(p, x)


# ---------------------------------------------------------------------------
# Kernel 2: fused UniBasis recurrence + Frobenius norms + tau mix + Combination
#
# Grid iterates over the level axis k = 0..K ("arbitrary", sequential).
#   level 0: u0 = X/||X||_F ; init state ; acc  = wh_0*Hn_0 + wu_0*u0
#   level k: v = P @ v_{k-1} (MXU, bf16 ops, f32 accum)
#            v -= <v,v_{k-1}>v_{k-1} + <v,v_{k-2}>v_{k-2} ; v /= ||v||_F
#            alpha = cos_t / (1 + (k-1) cos_t)
#            beta  = sqrt(max(1 - alpha^2 ||s||_F^2, eps))
#            u_k = alpha*s + beta*v ; s += u_k ; acc += wh_k*Hn_k + wu_k*u_k
# P's index_map is constant -> the P tile is DMA'd once and stays resident in
# VMEM across all hops; the output block is the resident accumulator.
# TODO(synk): for large graphs (P not fitting VMEM) this kernel needs an
# N-tiled variant with a two-pass cross-tile reduction for the Frobenius dots.
# ---------------------------------------------------------------------------
def _fdot(a, b):
    # Frobenius inner product kept as [1,1] for clean TPU broadcasting.
    return jnp.sum(a * b, axis=(0, 1), keepdims=True)


def _unibasis_fused_kernel(cos_ref, wh_ref, wu_ref,       # SMEM scalars
                           p_ref, h_ref, x_ref,           # VMEM inputs
                           o_ref,                         # resident output acc
                           v_prev, v_prev2, s_acc):       # VMEM scratch state
    eps = 1e-8
    k = pl.program_id(0)
    cos_t = cos_ref[0]

    # Level-k homophily basis, Frobenius-normalized in-kernel.
    h = h_ref[0]
    h_n = h / (jnp.sqrt(_fdot(h, h)) + eps)

    @pl.when(k == 0)
    def _():
        x = x_ref[...]
        u0 = x / (jnp.sqrt(_fdot(x, x)) + eps)
        v_prev[...] = u0
        v_prev2[...] = jnp.zeros_like(v_prev2)
        s_acc[...] = u0
        o_ref[...] = wh_ref[0] * h_n + wu_ref[0] * u0

    @pl.when(k > 0)
    def _():
        vp = v_prev[...]
        vp2 = v_prev2[...]
        # P @ v_{k-1} on the MXU (bf16 operands, f32 accumulation).
        v = jnp.dot(p_ref[...], vp.astype(jnp.bfloat16),
                    preferred_element_type=jnp.float32)
        # Three-term Gram-Schmidt + Frobenius normalization (in-kernel dots).
        v = v - _fdot(v, vp) * vp - _fdot(v, vp2) * vp2
        v = v / (jnp.sqrt(_fdot(v, v)) + eps)

        kf = k.astype(jnp.float32)
        alpha = cos_t / (1.0 + (kf - 1.0) * cos_t)
        s = s_acc[...]
        beta = jnp.sqrt(jnp.maximum(1.0 - alpha * alpha * _fdot(s, s), eps))
        u_k = alpha * s + beta * v

        s_acc[...] = s + u_k
        v_prev2[...] = vp
        v_prev[...] = v
        o_ref[...] += wh_ref[k] * h_n + wu_ref[k] * u_k


def unibasis_combination_fused(cos_t, wh, wu, p_bf16, h_stack, x_pad):
    levels, n, fp = h_stack.shape
    grid_spec = pltpu.PrefetchScalarGridSpec(
        num_scalar_prefetch=0,
        grid=(levels,),
        in_specs=[
            pl.BlockSpec(memory_space=pltpu.MemorySpace.SMEM),   # cos_t (1,)
            pl.BlockSpec(memory_space=pltpu.MemorySpace.SMEM),   # wh  (K+1,)
            pl.BlockSpec(memory_space=pltpu.MemorySpace.SMEM),   # wu  (K+1,)
            pl.BlockSpec((n, n), lambda k: (0, 0)),              # P, resident
            pl.BlockSpec((1, n, fp), lambda k: (k, 0, 0)),       # H_k
            pl.BlockSpec((n, fp), lambda k: (0, 0)),             # X, resident
        ],
        out_specs=pl.BlockSpec((n, fp), lambda k: (0, 0)),       # accumulator
        scratch_shapes=[pltpu.VMEM((n, fp), jnp.float32),        # v_prev
                        pltpu.VMEM((n, fp), jnp.float32),        # v_prev2
                        pltpu.VMEM((n, fp), jnp.float32)],       # s (running sum)
    )
    return pl.pallas_call(
        _unibasis_fused_kernel,
        out_shape=jax.ShapeDtypeStruct((n, fp), jnp.float32),
        grid_spec=grid_spec,
        compiler_params=pltpu.CompilerParams(
            dimension_semantics=("arbitrary",)),
    )(cos_t, wh, wu, p_bf16, h_stack, x_pad)


# ---------------------------------------------------------------------------
# Module wrapper (mirrors the PyTorch forward, eval mode)
# ---------------------------------------------------------------------------
class UniBasisViewGenerator:
    def __init__(self, base_feature_dim: int, K: int, combination_dropout: float,
                 *, key):
        self.base_feature_dim = base_feature_dim
        self.K = K
        self.combination_dropout = combination_dropout
        level = K + 1
        # Combination.comb_weight (1, level, 1) in the reference; stored flat.
        self.comb_weight = (jnp.full((level,), 1.0 / level, jnp.float32)
                            + 0.01 * jax.random.normal(key, (level,), jnp.float32))

    def __call__(self, p_matrix, initial_features, h_hat_for_view, tau_for_view,
                 precomputed_homophily_bases):
        n, f = initial_features.shape
        assert f == self.base_feature_dim
        assert len(precomputed_homophily_bases) == self.K + 1

        fp = _round_up(max(f, 128), 128)            # lane-dense feature axis
        x_pad = _pad_features(initial_features, fp)
        h_stack = jnp.stack([_pad_features(h, fp)
                             for h in precomputed_homophily_bases], axis=0)
        p_bf16 = p_matrix.astype(jnp.bfloat16)

        cos_t = jnp.asarray(
            [math.cos(0.5 * math.pi * (1.0 - float(h_hat_for_view)))], jnp.float32)
        tau = jnp.float32(tau_for_view)
        # Fold tau / (1 - tau) into the Combination weights (scalar algebra).
        wh = (self.comb_weight * tau).astype(jnp.float32)
        wu = (self.comb_weight * (1.0 - tau)).astype(jnp.float32)

        # TODO(synk): training-mode Combination dropout omitted (eval forward).
        out_pad = unibasis_combination_fused(cos_t, wh, wu, p_bf16, h_stack, x_pad)
        return out_pad[:, :f]                       # [N, F]


# ---------------------------------------------------------------------------
# Pure-JAX reference (same math, same bf16 MXU casts) for a sanity check.
# ---------------------------------------------------------------------------
def _reference_forward(p, x, K, tau, h_hat, bases, comb_weight):
    eps = 1e-8
    cos_t = math.cos(0.5 * math.pi * (1.0 - float(h_hat)))

    def fnorm(a):
        return jnp.sqrt(jnp.sum(a * a)) + eps

    h_norm = [b.astype(jnp.float32) / fnorm(b.astype(jnp.float32)) for b in bases]
    x = x.astype(jnp.float32)
    p_bf = p.astype(jnp.bfloat16)
    u0 = x / fnorm(x)
    u_list = [u0]
    s = u0
    v_prev, v_prev2 = u0, jnp.zeros_like(u0)
    for k in range(1, K + 1):
        v = jnp.dot(p_bf, v_prev.astype(jnp.bfloat16),
                    preferred_element_type=jnp.float32)
        v = v - jnp.sum(v * v_prev) * v_prev - jnp.sum(v * v_prev2) * v_prev2
        v = v / fnorm(v)
        alpha = cos_t / (1.0 + (k - 1) * cos_t)
        beta = jnp.sqrt(jnp.maximum(1.0 - alpha * alpha * jnp.sum(s * s), eps))
        u_k = alpha * s + beta * v
        u_list.append(u_k)
        s = s + u_k
        v_prev2, v_prev = v_prev, v
    out = jnp.zeros_like(x)
    for k in range(K + 1):
        out = out + comb_weight[k] * (tau * h_norm[k] + (1.0 - tau) * u_list[k])
    return out


# ---------------------------------------------------------------------------
if __name__ == "__main__":
    key = jax.random.PRNGKey(0)
    k_adj, k_feat, k_param = jax.random.split(key, 3)

    N, F, K = 64, 32, 3               # nodes, base_feature_dim, hops

    # Deterministic dense "propagation matrix" P_t (row-normalized symmetric).
    a = jax.random.uniform(k_adj, (N, N), jnp.float32)
    a = 0.5 * (a + a.T) + jnp.eye(N, dtype=jnp.float32)
    p_matrix = a / jnp.sum(a, axis=1, keepdims=True)

    # Initial features X_t.
    x = jax.random.normal(k_feat, (N, F), jnp.float32)

    # Precomputed (shared) homophily bases [X, PX, ..., P^K X] via the tiled,
    # pipelined Pallas matmul (lane-dense padded operands, bf16 MXU path).
    fp = _round_up(max(F, 128), 128)
    homophily_bases = [x]
    h_pad = _pad_features(x, fp)
    for _ in range(K):
        h_pad = pallas_matmul(p_matrix, h_pad)      # [N, Fp] f32
        homophily_bases.append(h_pad[:, :F])

    gen = UniBasisViewGenerator(base_feature_dim=F, K=K, combination_dropout=0.1,
                                key=k_param)
    view = gen(p_matrix, x, h_hat_for_view=0.7, tau_for_view=0.5,
               precomputed_homophily_bases=homophily_bases)
    view = jax.block_until_ready(view)

    assert view.shape == (N, F), view.shape
    assert view.dtype == jnp.float32
    assert bool(jnp.all(jnp.isfinite(view)))

    # Sanity check against a pure-JAX reference with identical math.
    ref = _reference_forward(p_matrix, x, K, 0.5, 0.7, homophily_bases,
                             gen.comb_weight)
    max_err = float(jnp.max(jnp.abs(view - ref)))
    assert max_err < 1e-4, f"max abs err {max_err}"

    print("KERNEL_OK")
</pallas_src>

<mosaic_0001>
module attributes {stable_mosaic.version = 11 : i64} {
  func.func @_matmul_kernel(%arg0: i32, %arg1: i32, %arg2: i32, %arg3: memref<64x64xbf16, #tpu.memory_space<vmem>>, %arg4: memref<64x128xbf16, #tpu.memory_space<vmem>>, %arg5: memref<64x128xf32, #tpu.memory_space<vmem>>, %arg6: memref<64x128xf32, #tpu.memory_space<vmem>>) attributes {dimension_semantics = [#tpu.dimension_semantics<parallel>, #tpu.dimension_semantics<parallel>, #tpu.dimension_semantics<arbitrary>], iteration_bounds = array<i64: 1, 1, 1>, scalar_prefetch = 0 : i64, scratch_operands = 1 : i64, tpu.core_type = #tpu.core_type<tc>, window_params = [{transform_indices = @transform_0, window_bounds = array<i64: 64, 64>}, {transform_indices = @transform_1, window_bounds = array<i64: 64, 128>}, {transform_indices = @transform_2, window_bounds = array<i64: 64, 128>}]} {
    %c0_i32 = arith.constant 0 : i32
    %0 = arith.cmpi eq, %arg2, %c0_i32 : i32
    %1 = arith.extui %0 : i1 to i32
    %c0_i32_0 = arith.constant 0 : i32
    %2 = arith.cmpi ne, %1, %c0_i32_0 : i32
    scf.if %2 {
      %cst_10 = arith.constant 0.000000e+00 : f32
      %12 = vector.broadcast %cst_10 : f32 to vector<64x128xf32>
      %c0_11 = arith.constant 0 : index
      %c0_12 = arith.constant 0 : index
      %13 = vector.load %arg6[%c0_11, %c0_12] : memref<64x128xf32, #tpu.memory_space<vmem>>, vector<64x128xf32>
      tpu.vector_store %arg6[%c0_11, %c0_12], %12 {strides = array<i32>} : memref<64x128xf32, #tpu.memory_space<vmem>>, vector<64x128xf32>,
    } else {
    }
    %c0 = arith.constant 0 : index
    %c0_1 = arith.constant 0 : index
    %3 = vector.load %arg6[%c0, %c0_1] : memref<64x128xf32, #tpu.memory_space<vmem>>, vector<64x128xf32>
    %c0_2 = arith.constant 0 : index
    %c0_3 = arith.constant 0 : index
    %4 = vector.load %arg3[%c0_2, %c0_3] : memref<64x64xbf16, #tpu.memory_space<vmem>>, vector<64x64xbf16>
    %c0_4 = arith.constant 0 : index
    %c0_5 = arith.constant 0 : index
    %5 = vector.load %arg4[%c0_4, %c0_5] : memref<64x128xbf16, #tpu.memory_space<vmem>>, vector<64x128xbf16>
    %cst = arith.constant dense<0.000000e+00> : vector<64x128xf32>
    %6 = tpu.matmul %4, %5, %cst {dimension_numbers = #tpu.dot_dimension_numbers<[1], [0], [0], [1], [0, 0, 1, 1], [], []>} : vector<64x64xbf16>, vector<64x128xbf16>, vector<64x128xf32> -> vector<64x128xf32>
    %7 = arith.addf %3, %6 : vector<64x128xf32>
    %c0_6 = arith.constant 0 : index
    %c0_7 = arith.constant 0 : index
    %8 = vector.load %arg6[%c0_6, %c0_7] : memref<64x128xf32, #tpu.memory_space<vmem>>, vector<64x128xf32>
    tpu.vector_store %arg6[%c0_6, %c0_7], %7 {strides = array<i32>} : memref<64x128xf32, #tpu.memory_space<vmem>>, vector<64x128xf32>,
    %c0_i32_8 = arith.constant 0 : i32
    %9 = arith.cmpi eq, %arg2, %c0_i32_8 : i32
    %10 = arith.extui %9 : i1 to i32
    %c0_i32_9 = arith.constant 0 : i32
    %11 = arith.cmpi ne, %10, %c0_i32_9 : i32
    scf.if %11 {
      %c0_10 = arith.constant 0 : index
      %c0_11 = arith.constant 0 : index
      %12 = vector.load %arg6[%c0_10, %c0_11] : memref<64x128xf32, #tpu.memory_space<vmem>>, vector<64x128xf32>
      %c0_12 = arith.constant 0 : index
      %c0_13 = arith.constant 0 : index
      %13 = vector.load %arg5[%c0_12, %c0_13] : memref<64x128xf32, #tpu.memory_space<vmem>>, vector<64x128xf32>
      tpu.vector_store %arg5[%c0_12, %c0_13], %12 {strides = array<i32>} : memref<64x128xf32, #tpu.memory_space<vmem>>, vector<64x128xf32>,
    } else {
    }
    return
  }
  func.func @transform_0(%arg0: i32, %arg1: i32, %arg2: i32) -> (i32, i32) {
    %c0_i32 = arith.constant 0 : i32
    return %arg0, %arg2 : i32, i32
  }
  func.func @transform_1(%arg0: i32, %arg1: i32, %arg2: i32) -> (i32, i32) {
    %c0_i32 = arith.constant 0 : i32
    return %arg2, %arg1 : i32, i32
  }
  func.func @transform_2(%arg0: i32, %arg1: i32, %arg2: i32) -> (i32, i32) {
    %c0_i32 = arith.constant 0 : i32
    return %arg0, %arg1 : i32, i32
  }
}

</mosaic_0001>

<llo_original>
// kernel: tpu_custom_call.1
$region0: #{tpu_custom_call.1}
  #allocation0 [shape = 'u32[]', space=smem, size = 0x4, offset = 0x4, fixed_abs, tag = 'smem constant byte address 0x4 - core index']
  #allocation1 [shape = 'u32[144,128]{1,0:T(1,128)}', space=vmem, size = 0x12000, scoped, tag = 'internal scratch']
  #allocation2 [shape = 'f32[64,128]{1,0:T(8,128)}', space=vmem, size = 0x8000, scoped, tag = 'scratch operand']
  %s0 = inlined_call_operand.hbm [shape: bf16[64,64], index: 0, kind: input, shape index: {}]
  %s1 = inlined_call_operand.hbm [shape: bf16[64,128], index: 1, kind: input, shape index: {}]
  %s2 = inlined_call_operand.hbm [shape: f32[64,128], index: 2, kind: output, shape index: {}]
  %s3 = sld [smem:[#allocation0]]
  $region34: #{tpu_custom_call.1} parent=0
    _
  %s5 = ssub.s32 1, %s3
  %s6 = scalar_select 0, %s5, %s3
  $region1: #{tpu_custom_call.1} parent=0
    #allocation3 [shape = 'u8[16384]{0}', space=vmem, size = 0x4000, scoped, tag = 'input window, operand 0, single buffered']
    #allocation4 [shape = 's32[1]{0}', space=sflag, size = 0x4, scoped, tag = 'scoped memory for tpu_custom_call.1']
    #allocation5 [shape = 's32[1]{0}', space=sflag, size = 0x4, scoped, tag = 'scoped memory for tpu_custom_call.1']
    #allocation6 [shape = 'u8[16384]{0}', space=vmem, size = 0x4000, scoped, tag = 'input window, operand 1, single buffered']
    #allocation7 [shape = 's32[1]{0}', space=sflag, size = 0x4, scoped, tag = 'scoped memory for tpu_custom_call.1']
    #allocation8 [shape = 'u8[32768]{0}', space=vmem, size = 0x8000, scoped, tag = 'output window, operand 0, single buffered']
    %7 = vsyncpa [#allocation4], 0
    %8 = vsyncpa [#allocation7], 0
    %9 = vsyncpa [#allocation5], 0
    // Predicated region
    $region2: #{tpu_custom_call.1} parent=1 // pred_check
      _
    $region3: #{tpu_custom_call.1} parent=1 // pred_check_branch
      %11 = sbr.rel (0) target = $region5
    $region4: #{tpu_custom_call.1} parent=1 // pred_region
      %s13 = ssub.s32 512, 512
      %14 = vsyncadd [#allocation4], %s13
      %s15 = sshll.u32 [#allocation3], 4
      %s16 = int_to_ptr.vmem [resolvable:$true] %s15
      %21 = dma.hbm_to_vmem [thread:$0]  %s0, 512, %s16, [#allocation4], 64, 64, 4
    $region5: #{tpu_custom_call.1} parent=1 // pred_fallthru
      _
    // Predicated region
    $region6: #{tpu_custom_call.1} parent=1 // pred_check
      _
    $region7: #{tpu_custom_call.1} parent=1 // pred_check_branch
      %23 = sbr.rel (0) target = $region9
    $region8: #{tpu_custom_call.1} parent=1 // pred_region
      %s25 = ssub.s32 512, 512
      %26 = vsyncadd [#allocation7], %s25
      %s27 = sshll.u32 [#allocation6], 4
      %s28 = int_to_ptr.vmem [resolvable:$true] %s27
      %33 = dma.hbm_to_vmem [thread:$0]  %s1, 512, %s28, [#allocation7], 64, 64, 4
    $region9: #{tpu_custom_call.1} parent=1 // pred_fallthru
      _
    // Predicated region
    $region10: #{tpu_custom_call.1} parent=1 // pred_check
      _
    $region11: #{tpu_custom_call.1} parent=1 // pred_check_branch
      %35 = sbr.rel (0) target = $region13
    $region12: #{tpu_custom_call.1} parent=1 // pred_region
      %36 = dma.done [#allocation4], 512
    $region13: #{tpu_custom_call.1} parent=1 // pred_fallthru
      _
    // Predicated region
    $region14: #{tpu_custom_call.1} parent=1 // pred_check
      _
    $region15: #{tpu_custom_call.1} parent=1 // pred_check_branch
      %38 = sbr.rel (0) target = $region17
    $region16: #{tpu_custom_call.1} parent=1 // pred_region
      %39 = dma.done [#allocation7], 512
    $region17: #{tpu_custom_call.1} parent=1 // pred_fallthru
      _
    %p41 = scmp.eq.s32.totalorder 0, 0
    // Predicated region
    $region18: #{tpu_custom_call.1} parent=1 // pred_check
      %p42 = pneg %p41
    $region19: #{tpu_custom_call.1} parent=1 // pred_check_branch
      %44 = sbr.rel (%p42) target = $region21
    $region20: #{tpu_custom_call.1} parent=1 // pred_region
      %45 = vst [vmem:[#allocation2] sm:$0xff] 0.0
      %46 = vst [vmem:[#allocation2 + $0x8] sm:$0xff] 0.0
      %47 = vst [vmem:[#allocation2 + $0x10] sm:$0xff] 0.0
      %48 = vst [vmem:[#allocation2 + $0x18] sm:$0xff] 0.0
      %49 = vst [vmem:[#allocation2 + $0x20] sm:$0xff] 0.0
      %50 = vst [vmem:[#allocation2 + $0x28] sm:$0xff] 0.0
      %51 = vst [vmem:[#allocation2 + $0x30] sm:$0xff] 0.0
      %52 = vst [vmem:[#allocation2 + $0x38] sm:$0xff] 0.0
    $region21: #{tpu_custom_call.1} parent=1 // pred_fallthru
      _
    %v53 = vld [vmem:[#allocation2] sm:$0xff]
    %v54 = vld [vmem:[#allocation2 + $0x8] sm:$0xff]
    %v55 = vld [vmem:[#allocation2 + $0x10] sm:$0xff]
    %v56 = vld [vmem:[#allocation2 + $0x18] sm:$0xff]
    %v57 = vld [vmem:[#allocation2 + $0x20] sm:$0xff]
    %v58 = vld [vmem:[#allocation2 + $0x28] sm:$0xff]
    %v59 = vld [vmem:[#allocation2 + $0x30] sm:$0xff]
    %v60 = vld [vmem:[#allocation2 + $0x38] sm:$0xff]
    %v61 = vld [vmem:[#allocation3] sm:$0xf]
    %v62 = vld [vmem:[#allocation3 + $0x4] sm:$0xf]
    %v63 = vld [vmem:[#allocation3 + $0x8] sm:$0xf]
    %v64 = vld [vmem:[#allocation3 + $0xc] sm:$0xf]
    %v65 = vld [vmem:[#allocation3 + $0x10] sm:$0xf]
    %v66 = vld [vmem:[#allocation3 + $0x14] sm:$0xf]
    %v67 = vld [vmem:[#allocation3 + $0x18] sm:$0xf]
    %v68 = vld [vmem:[#allocation3 + $0x1c] sm:$0xf]
    %v69 = vld [vmem:[#allocation6] sm:$0xf]
    %v70 = vld [vmem:[#allocation6 + $0x4] sm:$0xf]
    %v71 = vld [vmem:[#allocation6 + $0x8] sm:$0xf]
    %v72 = vld [vmem:[#allocation6 + $0xc] sm:$0xf]
    %v73 = vld [vmem:[#allocation6 + $0x10] sm:$0xf]
    %v74 = vld [vmem:[#allocation6 + $0x14] sm:$0xf]
    %v75 = vld [vmem:[#allocation6 + $0x18] sm:$0xf]
    %v76 = vld [vmem:[#allocation6 + $0x1c] sm:$0xf]
    %v85 = vunpack.c.l.b16 %v61
    %v86 = vunpack.c.l.b16 %v62
    %v87 = vunpack.c.l.b16 %v63
    %v88 = vunpack.c.l.b16 %v64
    %v89 = vunpack.c.l.b16 %v65
    %v90 = vunpack.c.l.b16 %v66
    %v91 = vunpack.c.l.b16 %v67
    %v92 = vunpack.c.l.b16 %v68
    %v93 = vpack.c.b16 %v86, %v85
    %v94 = vpack.c.b16 %v88, %v87
    %v95 = vpack.c.b16 %v90, %v89
    %v96 = vpack.c.b16 %v92, %v91
    %v105 = vunpack.c.l.b16 %v69
    %v106 = vunpack.c.l.b16 %v70
    %v107 = vunpack.c.l.b16 %v71
    %v108 = vunpack.c.l.b16 %v72
    %v109 = vunpack.c.l.b16 %v73
    %v110 = vunpack.c.l.b16 %v74
    %v111 = vunpack.c.l.b16 %v75
    %v112 = vunpack.c.l.b16 %v76
    %v113 = vpack.c.b16 %v106, %v105
    %v114 = vpack.c.b16 %v108, %v107
    %v115 = vpack.c.b16 %v110, %v109
    %v116 = vpack.c.b16 %v112, %v111
    %vm121 = vcmask 523264
    %v123 = vsel %vm121, %v93, 0
    %v126 = vsel %vm121, %v94, 0
    %v129 = vsel %vm121, %v95, 0
    %v132 = vsel %vm121, %v96, 0
    %134 = vmatprep.subr.bf16.mxu0 0
    %135 = vmatpush1.bf16.msra.mxu0 %v113
    %136 = vmatprep.subr.bf16.mxu0 0
    %137 = vmatpush1.bf16.msra.mxu0 %v114
    %138 = vmatprep.subr.bf16.mxu0 0
    %139 = vmatpush1.bf16.msra.mxu0 %v115
    %140 = vmatprep.subr.bf16.mxu0 0
    %141 = vmatpush1.bf16.msra.mxu0 %v116
    %142 = vmatprep.subr.bf16.mxu0 0
    %143 = vmatpush1.bf16.msra.mxu0 0
    %144 = vmatprep.subr.bf16.mxu0 0
    %145 = vmatpush1.bf16.msra.mxu0 0
    %146 = vmatprep.subr.bf16.mxu0 0
    %147 = vmatpush1.bf16.msra.mxu0 0
    %148 = vmatprep.subr.bf16.mxu0 0
    %149 = vmatpush1.bf16.msra.mxu0 0
    %150 = vmatprep.subr.bf16.mxu0 0
    %151 = vmatpush1.bf16.msra.mxu0 0
    %152 = vmatprep.subr.bf16.mxu0 0
    %153 = vmatpush1.bf16.msra.mxu0 0
    %154 = vmatprep.subr.bf16.mxu0 0
    %155 = vmatpush1.bf16.msra.mxu0 0
    %156 = vmatprep.subr.bf16.mxu0 0
    %157 = vmatpush1.bf16.msra.mxu0 0
    %158 = vmatprep.subr.bf16.mxu0 0
    %159 = vmatpush1.bf16.msra.mxu0 0
    %160 = vmatprep.subr.bf16.mxu0 0
    %161 = vmatpush1.bf16.msra.mxu0 0
    %162 = vmatprep.subr.bf16.mxu0 0
    %163 = vmatpush1.bf16.msra.mxu0 0
    %164 = vmatprep.subr.bf16.mxu0 0
    %165 = vmatpush1.bf16.msra.mxu0 0
    %166 = vmatprep.mubr.bf16.mxu0 0
    %167 = vmatmul.mubr.bf16.gmra.mrb[0].mxu0 %v123
    %v168 = vpop.f32.mrb[0].mxu0
    %v169 = vadd.f32 0.0, %v168
    %v170 = vpop.f32.mrb[0].mxu0
    %v171 = vpop.f32.mrb[0].mxu0
    %v172 = vadd.f32 0.0, %v171
    %v173 = vpop.f32.mrb[0].mxu0
    %174 = vmatprep.mubr.bf16.mxu0 0
    %175 = vmatmul.mubr.bf16.gmra.mrb[0].mxu0 %v126
    %v176 = vpop.f32.mrb[0].mxu0
    %v177 = vadd.f32 0.0, %v176
    %v178 = vpop.f32.mrb[0].mxu0
    %v179 = vpop.f32.mrb[0].mxu0
    %v180 = vadd.f32 0.0, %v179
    %v181 = vpop.f32.mrb[0].mxu0
    %182 = vmatprep.mubr.bf16.mxu0 0
    %183 = vmatmul.mubr.bf16.gmra.mrb[0].mxu0 %v129
    %v184 = vpop.f32.mrb[0].mxu0
    %v185 = vadd.f32 0.0, %v184
    %v186 = vpop.f32.mrb[0].mxu0
    %v187 = vpop.f32.mrb[0].mxu0
    %v188 = vadd.f32 0.0, %v187
    %v189 = vpop.f32.mrb[0].mxu0
    %190 = vmatprep.mubr.bf16.mxu0 0
    %191 = vmatmul.mubr.bf16.gmra.mrb[0].mxu0 %v132
    %v192 = vpop.f32.mrb[0].mxu0
    %v193 = vadd.f32 0.0, %v192
    %v194 = vpop.f32.mrb[0].mxu0
    %v195 = vpop.f32.mrb[0].mxu0
    %v196 = vadd.f32 0.0, %v195
    %v197 = vpop.f32.mrb[0].mxu0
    %198 = vdwg.mxu0
    %v199 = vadd.f32 %v53, %v169
    %v200 = vadd.f32 %v54, %v172
    %v201 = vadd.f32 %v55, %v177
    %v202 = vadd.f32 %v56, %v180
    %v203 = vadd.f32 %v57, %v185
    %v204 = vadd.f32 %v58, %v188
    %v205 = vadd.f32 %v59, %v193
    %v206 = vadd.f32 %v60, %v196
    %207 = vst [vmem:[#allocation2] sm:$0xff] %v199
    %208 = vst [vmem:[#allocation2 + $0x8] sm:$0xff] %v200
    %209 = vst [vmem:[#allocation2 + $0x10] sm:$0xff] %v201
    %210 = vst [vmem:[#allocation2 + $0x18] sm:$0xff] %v202
    %211 = vst [vmem:[#allocation2 + $0x20] sm:$0xff] %v203
    %212 = vst [vmem:[#allocation2 + $0x28] sm:$0xff] %v204
    %213 = vst [vmem:[#allocation2 + $0x30] sm:$0xff] %v205
    %214 = vst [vmem:[#allocation2 + $0x38] sm:$0xff] %v206
    // Predicated region
    $region22: #{tpu_custom_call.1} parent=1 // pred_check
      %p215 = pneg %p41
    $region23: #{tpu_custom_call.1} parent=1 // pred_check_branch
      %217 = sbr.rel (%p215) target = $region25
    $region24: #{tpu_custom_call.1} parent=1 // pred_region
      %v218 = vld [vmem:[#allocation2] sm:$0xff]
      %v219 = vld [vmem:[#allocation2 + $0x8] sm:$0xff]
      %v220 = vld [vmem:[#allocation2 + $0x10] sm:$0xff]
      %v221 = vld [vmem:[#allocation2 + $0x18] sm:$0xff]
      %v222 = vld [vmem:[#allocation2 + $0x20] sm:$0xff]
      %v223 = vld [vmem:[#allocation2 + $0x28] sm:$0xff]
      %v224 = vld [vmem:[#allocation2 + $0x30] sm:$0xff]
      %v225 = vld [vmem:[#allocation2 + $0x38] sm:$0xff]
      %226 = vst [vmem:[#allocation8] sm:$0xff] %v218
      %227 = vst [vmem:[#allocation8 + $0x8] sm:$0xff] %v219
      %228 = vst [vmem:[#allocation8 + $0x10] sm:$0xff] %v220
      %229 = vst [vmem:[#allocation8 + $0x18] sm:$0xff] %v221
      %230 = vst [vmem:[#allocation8 + $0x20] sm:$0xff] %v222
      %231 = vst [vmem:[#allocation8 + $0x28] sm:$0xff] %v223
      %232 = vst [vmem:[#allocation8 + $0x30] sm:$0xff] %v224
      %233 = vst [vmem:[#allocation8 + $0x38] sm:$0xff] %v225
    $region25: #{tpu_custom_call.1} parent=1 // pred_fallthru
      _
    // Predicated region
    $region26: #{tpu_custom_call.1} parent=1 // pred_check
      _
    $region27: #{tpu_custom_call.1} parent=1 // pred_check_branch
      %235 = sbr.rel (0) target = $region29
    $region28: #{tpu_custom_call.1} parent=1 // pred_region
      %s237 = ssub.s32 1024, 1024
      %238 = vsyncadd [#allocation5], %s237
      %s239 = sshll.u32 [#allocation8], 4
      %s240 = int_to_ptr.vmem [resolvable:$true] %s239
      %245 = dma.vmem_to_hbm [thread:$0]  %s240, 1024, %s2, [#allocation5], 128, 128, 8
    $region29: #{tpu_custom_call.1} parent=1 // pred_fallthru
      _
    // Predicated region
    $region30: #{tpu_custom_call.1} parent=1 // pred_check
      _
    $region31: #{tpu_custom_call.1} parent=1 // pred_check_branch
      %247 = sbr.rel (0) target = $region33
    $region32: #{tpu_custom_call.1} parent=1 // pred_region
      %248 = dma.done [#allocation5], 1024
    $region33: #{tpu_custom_call.1} parent=1 // pred_fallthru
      _
    %249 = vsyncpa [#allocation4], 1
    %250 = vsyncpa [#allocation7], 1
    %251 = vsyncpa [#allocation5], 1

</llo_original>
